<compile_context>
chip_gen: v6e
topology: v6e:2x2x1
jax: 0.10.0
libtpu: 0.0.40
codegen_flags: <defaults>
</compile_context>

<pallas_src>
import math

import jax
import jax.numpy as jnp
from jax import lax
from jax.experimental import pallas as pl
from jax.experimental.pallas import tpu as pltpu

VOCAB = 39   # nn.Embedding(39, 32)
SEQ = 50     # PE rows (torch PE buffer forces S == 50)
DIM = 32     # embedding / PE dim


def _embed_pos_kernel(x_ref, w_ref, pe_ref, o_ref):
    # x_ref : (R, 1)  int32  flattened token ids for this grid step, R = TB*SEQ
    # w_ref : (V, D)  f32    embedding table (resident block)
    # pe_ref: (S, D)  f32    positional encoding (resident block)
    # o_ref : (R, D)  f32    flat output slab for this grid step
    r = x_ref.shape[0]
    v, _ = w_ref.shape
    s = pe_ref.shape[0]
    tb = r // s

    ids = x_ref[...]                                           # (R, 1)
    vocab_iota = lax.broadcasted_iota(jnp.int32, (r, v), 1)    # (R, V)
    # Exact 0/1 one-hot; note: out-of-range / negative ids map to an all-zero
    # embedding row here, whereas torch nn.Embedding would raise.
    onehot = (ids == vocab_iota).astype(jnp.float32)           # (R, V)

    # Single MXU matmul replaces the per-row gather.  HIGHEST precision keeps
    # the f32 weights exact through the MXU's bf16-pass emulation.
    emb = jnp.dot(onehot, w_ref[...],
                  preferred_element_type=jnp.float32,
                  precision=lax.Precision.HIGHEST)             # (R, D)

    # One hoisted PE broadcast per step (no per-iteration broadcast_in_dim).
    pe_full = jnp.tile(pe_ref[...], (tb, 1))                   # (R, D)
    o_ref[...] = emb + pe_full


def embedding_with_position(x, weight, pe, *, rows_per_step=None):
    """x: (B, SEQ) int; weight: (VOCAB, DIM) f32; pe: (SEQ, DIM) f32 -> (B, SEQ, DIM) f32."""
    B, S = x.shape
    V, D = weight.shape
    assert pe.shape == (S, D)

    # Default: one grid step covering the whole (small) batch.  For large B,
    # pass rows_per_step to chunk the batch; chunks are rounded to a multiple
    # of 8 so every block stays (8,128)-tileable, and multiple steps shard
    # across the two TensorCores on v7x via dimension_semantics.
    if rows_per_step is None or rows_per_step >= B:
        tb = B
    else:
        tb = max(8, (rows_per_step // 8) * 8)
    num_steps = (B + tb - 1) // tb
    Bp = num_steps * tb
    if Bp != B:
        x = jnp.pad(x, ((0, Bp - B), (0, 0)))   # padded rows use token id 0; sliced off below

    # Free metadata reshape: flatten ids so the kernel needs no in-kernel relayout.
    x_flat = x.reshape(Bp * S, 1).astype(jnp.int32)

    out2d = pl.pallas_call(
        _embed_pos_kernel,
        out_shape=jax.ShapeDtypeStruct((Bp * S, D), jnp.float32),
        grid_spec=pltpu.PrefetchScalarGridSpec(
            num_scalar_prefetch=0,
            grid=(num_steps,),
            in_specs=[
                pl.BlockSpec((tb * S, 1), lambda i: (i, 0)),   # token ids for this step
                pl.BlockSpec((V, D), lambda i: (0, 0)),        # embedding table (resident)
                pl.BlockSpec((S, D), lambda i: (0, 0)),        # positional encoding (resident)
            ],
            out_specs=pl.BlockSpec((tb * S, D), lambda i: (i, 0)),
        ),
        compiler_params=pltpu.CompilerParams(
            dimension_semantics=("parallel",),                 # megacore sharding on v7x
        ),
    )(x_flat, weight, pe)

    return out2d.reshape(Bp, S, D)[:B]


def make_positional_encoding(rows=SEQ, cols=DIM):
    pe = [[0.0] * cols for _ in range(rows)]
    for i in range(rows):
        for j in range(cols):
            fenmu = 10000.0 ** (j / cols)
            v = i / fenmu
            pe[i][j] = math.sin(v) if j % 2 == 0 else math.cos(v)
    return jnp.asarray(pe, dtype=jnp.float32)


def reference(x, weight, pe):
    # Pure-JAX reference of the torch forward.
    return weight[x] + pe[None, :, :]


if __name__ == "__main__":
    key = jax.random.PRNGKey(0)
    k_w, k_x = jax.random.split(key)

    # Deterministic parameter init: embed.weight ~ N(0, 0.1), shape (39, 32).
    weight = (0.1 * jax.random.normal(k_w, (VOCAB, DIM))).astype(jnp.float32)
    pe = make_positional_encoding()

    # Inputs: batch=2, seq=50 (PE broadcasting in torch requires seq == 50).
    B = 2
    x = jax.random.randint(k_x, (B, SEQ), 0, VOCAB, dtype=jnp.int32)

    out = embedding_with_position(x, weight, pe)      # single-step grid path
    out = jax.block_until_ready(out)

    ref = reference(x, weight, pe)
    assert out.shape == (B, SEQ, DIM)
    assert out.dtype == jnp.float32
    assert jnp.allclose(out, ref, atol=1e-5, rtol=1e-5), "mismatch vs reference (single-step)"

    # Also exercise the chunked multi-step grid path (8 batch rows per step).
    B2 = 16
    x2 = jax.random.randint(jax.random.PRNGKey(1), (B2, SEQ), 0, VOCAB, dtype=jnp.int32)
    out2 = jax.block_until_ready(embedding_with_position(x2, weight, pe, rows_per_step=8))
    assert jnp.allclose(out2, reference(x2, weight, pe), atol=1e-5, rtol=1e-5), \
        "mismatch vs reference (multi-step)"

    print("KERNEL_OK")
</pallas_src>

<mosaic_0001>
module attributes {stable_mosaic.version = 11 : i64} {
  func.func @_embed_pos_kernel(%arg0: i32, %arg1: memref<100x1xi32, #tpu.memory_space<vmem>>, %arg2: memref<39x32xf32, #tpu.memory_space<vmem>>, %arg3: memref<50x32xf32, #tpu.memory_space<vmem>>, %arg4: memref<100x32xf32, #tpu.memory_space<vmem>>) attributes {dimension_semantics = [#tpu.dimension_semantics<parallel>], iteration_bounds = array<i64: 1>, scalar_prefetch = 0 : i64, scratch_operands = 0 : i64, tpu.core_type = #tpu.core_type<tc>, window_params = [{transform_indices = @transform_0, window_bounds = array<i64: 100, 1>}, {pipeline_mode = #tpu.pipeline_mode<synchronous>, transform_indices = @transform_1, window_bounds = array<i64: 39, 32>}, {pipeline_mode = #tpu.pipeline_mode<synchronous>, transform_indices = @transform_2, window_bounds = array<i64: 50, 32>}, {transform_indices = @transform_3, window_bounds = array<i64: 100, 32>}]} {
    %c0 = arith.constant 0 : index
    %c0_0 = arith.constant 0 : index
    %0 = vector.load %arg1[%c0, %c0_0] : memref<100x1xi32, #tpu.memory_space<vmem>>, vector<100x1xi32>
    %1 = tpu.iota {dimensions = array<i32: 1>} : vector<100x39xi32>
    %2 = vector.broadcast %0 : vector<100x1xi32> to vector<100x39xi32>
    %3 = arith.cmpi eq, %2, %1 : vector<100x39xi32>
    %4 = arith.extui %3 : vector<100x39xi1> to vector<100x39xi32>
    %5 = arith.sitofp %4 : vector<100x39xi32> to vector<100x39xf32>
    %c0_1 = arith.constant 0 : index
    %c0_2 = arith.constant 0 : index
    %6 = vector.load %arg2[%c0_1, %c0_2] : memref<39x32xf32, #tpu.memory_space<vmem>>, vector<39x32xf32>
    %cst = arith.constant dense<0.000000e+00> : vector<100x32xf32>
    %7 = tpu.matmul %5, %6, %cst {dimension_numbers = #tpu.dot_dimension_numbers<[1], [0], [0], [1], [0, 0, 1, 1], [], []>, precision = #tpu.contract_precision<fp32>} : vector<100x39xf32>, vector<39x32xf32>, vector<100x32xf32> -> vector<100x32xf32>
    %c0_3 = arith.constant 0 : index
    %c0_4 = arith.constant 0 : index
    %8 = vector.load %arg3[%c0_3, %c0_4] : memref<50x32xf32, #tpu.memory_space<vmem>>, vector<50x32xf32>
    %9 = tpu.concatenate %8, %8 in 0 : vector<50x32xf32>, vector<50x32xf32> -> vector<100x32xf32>
    %10 = arith.addf %7, %9 : vector<100x32xf32>
    %c0_5 = arith.constant 0 : index
    %c0_6 = arith.constant 0 : index
    %11 = vector.load %arg4[%c0_5, %c0_6] : memref<100x32xf32, #tpu.memory_space<vmem>>, vector<100x32xf32>
    tpu.vector_store %arg4[%c0_5, %c0_6], %10 {strides = array<i32>} : memref<100x32xf32, #tpu.memory_space<vmem>>, vector<100x32xf32>,
    return
  }
  func.func @transform_0(%arg0: i32) -> (i32, i32) {
    %c0_i32 = arith.constant 0 : i32
    %c0_i32_0 = arith.constant 0 : i32
    return %arg0, %c0_i32 : i32, i32
  }
  func.func @transform_1(%arg0: i32) -> (i32, i32) {
    %c0_i32 = arith.constant 0 : i32
    %c0_i32_0 = arith.constant 0 : i32
    %c0_i32_1 = arith.constant 0 : i32
    return %c0_i32, %c0_i32_0 : i32, i32
  }
  func.func @transform_2(%arg0: i32) -> (i32, i32) {
    %c0_i32 = arith.constant 0 : i32
    %c0_i32_0 = arith.constant 0 : i32
    %c0_i32_1 = arith.constant 0 : i32
    return %c0_i32, %c0_i32_0 : i32, i32
  }
  func.func @transform_3(%arg0: i32) -> (i32, i32) {
    %c0_i32 = arith.constant 0 : i32
    %c0_i32_0 = arith.constant 0 : i32
    return %arg0, %c0_i32 : i32, i32
  }
}

</mosaic_0001>

<llo_original>
// kernel: tpu_custom_call.1
$region0: #{tpu_custom_call.1}
  #allocation0 [shape = 'u32[]', space=smem, size = 0x4, offset = 0x4, fixed_abs, tag = 'smem constant byte address 0x4 - core index']
  #allocation1 [shape = 'u32[144,128]{1,0:T(1,128)}', space=vmem, size = 0x12000, scoped, tag = 'internal scratch']
  %s0 = inlined_call_operand.vmem [shape: s32[100,1], index: 0, kind: input, shape index: {}]
  %s1 = inlined_call_operand.vmem [shape: f32[39,32], index: 1, kind: input, shape index: {}]
  %s2 = inlined_call_operand.vmem [shape: f32[50,32], index: 2, kind: input, shape index: {}]
  %s3 = inlined_call_operand.vmem [shape: f32[100,32], index: 3, kind: output, shape index: {}]
  %s4 = sld [smem:[#allocation0]]
  $region22: #{tpu_custom_call.1} parent=0
    _
  %s6 = ssub.s32 1, %s4
  %s7 = scalar_select 0, %s6, %s4
  // Predicated region
  $region2: #{tpu_custom_call.1} parent=0 // pred_check
    _
  $region3: #{tpu_custom_call.1} parent=0 // pred_check_branch
    %9 = sbr.rel (0) target = $region5
  $region4: #{tpu_custom_call.1} parent=0 // pred_region
    _
  $region5: #{tpu_custom_call.1} parent=0 // pred_fallthru
    _
  // Predicated region
  $region6: #{tpu_custom_call.1} parent=0 // pred_check
    _
  $region7: #{tpu_custom_call.1} parent=0 // pred_check_branch
    %11 = sbr.rel (0) target = $region9
  $region8: #{tpu_custom_call.1} parent=0 // pred_region
    _
  $region9: #{tpu_custom_call.1} parent=0 // pred_fallthru
    _
  // Predicated region
  $region10: #{tpu_custom_call.1} parent=0 // pred_check
    _
  $region11: #{tpu_custom_call.1} parent=0 // pred_check_branch
    %13 = sbr.rel (0) target = $region13
  $region12: #{tpu_custom_call.1} parent=0 // pred_region
    _
  $region13: #{tpu_custom_call.1} parent=0 // pred_fallthru
    _
  %v14 = vld [vmem:[%s0] sm:$0xff]
  %v15 = vld [vmem:[%s0 + $0x8] sm:$0xff]
  %v16 = vld [vmem:[%s0 + $0x10] sm:$0xff]
  %v17 = vld [vmem:[%s0 + $0x18] sm:$0xff]
  %v18 = vld [vmem:[%s0 + $0x20] sm:$0xff]
  %v19 = vld [vmem:[%s0 + $0x28] sm:$0xff]
  %v20 = vld [vmem:[%s0 + $0x30] sm:$0xff]
  %v21 = vld [vmem:[%s0 + $0x38] sm:$0xff]
  %v22 = vld [vmem:[%s0 + $0x40] sm:$0xff]
  %v23 = vld [vmem:[%s0 + $0x48] sm:$0xff]
  %v24 = vld [vmem:[%s0 + $0x50] sm:$0xff]
  %v25 = vld [vmem:[%s0 + $0x58] sm:$0xff]
  %v26 = vld [vmem:[%s0 + $0x60] sm:$0xf]
  %v27 = vlaneseq
  %v28 = vand.u32 %v27, 127
  %29 = vset.pattern.permute.xlu0 0
  %30 = vperm.xlu0 %29, %v14
  %v31 = vpop.permute.xlu0 %30
  %32 = vset.pattern.permute.xlu0 0
  %33 = vperm.xlu0 %32, %v15
  %v34 = vpop.permute.xlu0 %33
  %35 = vset.pattern.permute.xlu0 0
  %36 = vperm.xlu0 %35, %v16
  %v37 = vpop.permute.xlu0 %36
  %38 = vset.pattern.permute.xlu0 0
  %39 = vperm.xlu0 %38, %v17
  %v40 = vpop.permute.xlu0 %39
  %41 = vset.pattern.permute.xlu0 0
  %42 = vperm.xlu0 %41, %v18
  %v43 = vpop.permute.xlu0 %42
  %44 = vset.pattern.permute.xlu0 0
  %45 = vperm.xlu0 %44, %v19
  %v46 = vpop.permute.xlu0 %45
  %47 = vset.pattern.permute.xlu0 0
  %48 = vperm.xlu0 %47, %v20
  %v49 = vpop.permute.xlu0 %48
  %50 = vset.pattern.permute.xlu0 0
  %51 = vperm.xlu0 %50, %v21
  %v52 = vpop.permute.xlu0 %51
  %53 = vset.pattern.permute.xlu0 0
  %54 = vperm.xlu0 %53, %v22
  %v55 = vpop.permute.xlu0 %54
  %56 = vset.pattern.permute.xlu0 0
  %57 = vperm.xlu0 %56, %v23
  %v58 = vpop.permute.xlu0 %57
  %59 = vset.pattern.permute.xlu0 0
  %60 = vperm.xlu0 %59, %v24
  %v61 = vpop.permute.xlu0 %60
  %62 = vset.pattern.permute.xlu0 0
  %63 = vperm.xlu0 %62, %v25
  %v64 = vpop.permute.xlu0 %63
  %65 = vset.pattern.permute.xlu0 0
  %66 = vperm.xlu0 %65, %v26
  %v67 = vpop.permute.xlu0 %66
  %vm68 = vcmp.eq.s32.totalorder %v31, %v28
  %vm69 = vcmp.eq.s32.totalorder %v34, %v28
  %vm70 = vcmp.eq.s32.totalorder %v37, %v28
  %vm71 = vcmp.eq.s32.totalorder %v40, %v28
  %vm72 = vcmp.eq.s32.totalorder %v43, %v28
  %vm73 = vcmp.eq.s32.totalorder %v46, %v28
  %vm74 = vcmp.eq.s32.totalorder %v49, %v28
  %vm75 = vcmp.eq.s32.totalorder %v52, %v28
  %vm76 = vcmp.eq.s32.totalorder %v55, %v28
  %vm77 = vcmp.eq.s32.totalorder %v58, %v28
  %vm78 = vcmp.eq.s32.totalorder %v61, %v28
  %vm79 = vcmp.eq.s32.totalorder %v64, %v28
  %vm80 = vcmp.eq.s32.totalorder %v67, %v28
  %v81 = vsel %vm68, 1, 0
  %v82 = vsel %vm69, 1, 0
  %v83 = vsel %vm70, 1, 0
  %v84 = vsel %vm71, 1, 0
  %v85 = vsel %vm72, 1, 0
  %v86 = vsel %vm73, 1, 0
  %v87 = vsel %vm74, 1, 0
  %v88 = vsel %vm75, 1, 0
  %v89 = vsel %vm76, 1, 0
  %v90 = vsel %vm77, 1, 0
  %v91 = vsel %vm78, 1, 0
  %v92 = vsel %vm79, 1, 0
  %v93 = vsel %vm80, 1, 0
  %v94 = vcvt.s32.f32 %v81
  %v95 = vcvt.s32.f32 %v82
  %v96 = vcvt.s32.f32 %v83
  %v97 = vcvt.s32.f32 %v84
  %v98 = vcvt.s32.f32 %v85
  %v99 = vcvt.s32.f32 %v86
  %v100 = vcvt.s32.f32 %v87
  %v101 = vcvt.s32.f32 %v88
  %v102 = vcvt.s32.f32 %v89
  %v103 = vcvt.s32.f32 %v90
  %v104 = vcvt.s32.f32 %v91
  %v105 = vcvt.s32.f32 %v92
  %v106 = vcvt.s32.f32 %v93
  %v107 = vld [vmem:[%s1] sm:$0xff]
  %v108 = vld [vmem:[%s1 + $0x8] sm:$0xff]
  %v109 = vld [vmem:[%s1 + $0x10] sm:$0xff]
  %v110 = vld [vmem:[%s1 + $0x18] sm:$0xff]
  %v111 = vld [vmem:[%s1 + $0x20] sm:$0x7f]
  %v112 = vld [vmem:[%s2] sm:$0xff]
  %v113 = vld [vmem:[%s2 + $0x8] sm:$0xff]
  %v114 = vld [vmem:[%s2 + $0x10] sm:$0xff]
  %v115 = vld [vmem:[%s2 + $0x18] sm:$0xff]
  %v116 = vld [vmem:[%s2 + $0x20] sm:$0xff]
  %v117 = vld [vmem:[%s2 + $0x28] sm:$0xff]
  %v118 = vld [vmem:[%s2 + $0x30] sm:$0x3]
  %vm126 = vcmask 1041408
  %v127 = vrot.slane %v112, 6
  %v128 = vrot.slane %v113, 6
  %v129 = vsel %vm126, %v127, %v128
  %v130 = vrot.slane %v114, 6
  %v131 = vsel %vm126, %v128, %v130
  %v132 = vrot.slane %v115, 6
  %v133 = vsel %vm126, %v130, %v132
  %v134 = vrot.slane %v116, 6
  %v135 = vsel %vm126, %v132, %v134
  %v136 = vrot.slane %v117, 6
  %v137 = vsel %vm126, %v134, %v136
  %v138 = vrot.slane %v118, 6
  %v139 = vsel %vm126, %v136, %v138
  %v147 = vsel %vm126, %v118, %v127
  %vm148 = vcmask 318464
  %v150 = vsel %vm148, %v94, 0
  %v153 = vsel %vm148, %v95, 0
  %v156 = vsel %vm148, %v96, 0
  %v159 = vsel %vm148, %v97, 0
  %v162 = vsel %vm148, %v98, 0
  %v165 = vsel %vm148, %v99, 0
  %v168 = vsel %vm148, %v100, 0
  %v171 = vsel %vm148, %v101, 0
  %v174 = vsel %vm148, %v102, 0
  %v177 = vsel %vm148, %v103, 0
  %v180 = vsel %vm148, %v104, 0
  %v183 = vsel %vm148, %v105, 0
  %v186 = vsel %vm148, %v106, 0
  %vm188 = vcmask 1046528
  %v190 = vsel %vm188, %v111, 0
  %192 = vmatprep.subr.mxu0 0.0
  %193 = vmatpush1.msra.mxu0 0.0
  %194 = vmatprep.subr.mxu0 0.0
  %195 = vmatpush1.msra.mxu0 0.0
  %196 = vmatprep.subr.mxu0 0.0
  %197 = vmatpush1.msra.mxu0 0.0
  %198 = vmatprep.subr.mxu0 0.0
  %199 = vmatpush1.msra.mxu0 0.0
  %200 = vmatprep.subr.mxu0 0.0
  %201 = vmatpush1.msra.mxu0 0.0
  %202 = vmatprep.subr.mxu0 0.0
  %203 = vmatpush1.msra.mxu0 0.0
  %204 = vmatprep.subr.mxu0 0.0
  %205 = vmatpush1.msra.mxu0 0.0
  %206 = vmatprep.subr.mxu0 0.0
  %207 = vmatpush1.msra.mxu0 0.0
  %208 = vmatprep.subr.mxu0 0.0
  %209 = vmatpush1.msra.mxu0 0.0
  %210 = vmatprep.subr.mxu0 0.0
  %211 = vmatpush1.msra.mxu0 0.0
  %212 = vmatprep.subr.mxu0 0.0
  %213 = vmatpush1.msra.mxu0 0.0
  %214 = vmatprep.subr.mxu0 0.0
  %v215 = vand.u32 %v190, 4294901760
  %216 = vmatpush1.msra.mxu0 %v215
  %217 = vmatprep.subr.mxu0 0.0
  %v218 = vand.u32 %v110, 4294901760
  %219 = vmatpush1.msra.mxu0 %v218
  %220 = vmatprep.subr.mxu0 0.0
  %v221 = vand.u32 %v109, 4294901760
  %222 = vmatpush1.msra.mxu0 %v221
  %223 = vmatprep.subr.mxu0 0.0
  %v224 = vand.u32 %v108, 4294901760
  %225 = vmatpush1.msra.mxu0 %v224
  %226 = vmatprep.subr.mxu0 0.0
  %v227 = vand.u32 %v107, 4294901760
  %228 = vmatpush1.msra.mxu0 %v227
  %229 = vmatprep.subr.mxu0 0.0
  %230 = vmatpush2.msra.mxu0 0.0
  %231 = vmatprep.subr.mxu0 0.0
  %232 = vmatpush2.msra.mxu0 0.0
  %233 = vmatprep.subr.mxu0 0.0
  %234 = vmatpush2.msra.mxu0 0.0
  %235 = vmatprep.subr.mxu0 0.0
  %236 = vmatpush2.msra.mxu0 0.0
  %237 = vmatprep.subr.mxu0 0.0
  %238 = vmatpush2.msra.mxu0 0.0
  %239 = vmatprep.subr.mxu0 0.0
  %240 = vmatpush2.msra.mxu0 0.0
  %241 = vmatprep.subr.mxu0 0.0
  %242 = vmatpush2.msra.mxu0 0.0
  %243 = vmatprep.subr.mxu0 0.0
  %244 = vmatpush2.msra.mxu0 0.0
  %245 = vmatprep.subr.mxu0 0.0
  %246 = vmatpush2.msra.mxu0 0.0
  %247 = vmatprep.subr.mxu0 0.0
  %248 = vmatpush2.msra.mxu0 0.0
  %249 = vmatprep.subr.mxu0 0.0
  %250 = vmatpush2.msra.mxu0 0.0
  %251 = vmatprep.subr.mxu0 0.0
  %252 = vmatpush2.msra.mxu0 0.0
  %253 = vmatprep.subr.mxu0 0.0
  %254 = vmatpush2.msra.mxu0 0.0
  %255 = vmatprep.subr.mxu0 0.0
  %256 = vmatpush2.msra.mxu0 0.0
  %257 = vmatprep.subr.mxu0 0.0
  %258 = vmatpush2.msra.mxu0 0.0
  %259 = vmatprep.subr.mxu0 0.0
  %260 = vmatpush2.msra.mxu0 0.0
  %261 = vmatprep.mubr.f32.mxu0 0.0
  %v262 = vand.u32 %v150, 4294901760
  %v263 = vsub.f32 %v150, %v262
  %v264 = vand.u32 %v263, 4294901760
  %v265 = vsub.f32 %v263, %v264
  %v266 = vand.u32 %v265, 4294901760
  %267 = vmatmul.mubr.f32.gmra.mxu0 %v266
  %v268 = vpop.f32.mrf.mxu0
  %v269 = vadd.f32 %v112, %v268
  %v270 = vpop.f32.mrf.mxu0
  %271 = vmatprep.mubr.f32.mxu0 0.0
  %v272 = vand.u32 %v153, 4294901760
  %v273 = vsub.f32 %v153, %v272
  %v274 = vand.u32 %v273, 4294901760
  %v275 = vsub.f32 %v273, %v274
  %v276 = vand.u32 %v275, 4294901760
  %277 = vmatmul.mubr.f32.gmra.mxu0 %v276
  %v278 = vpop.f32.mrf.mxu0
  %v279 = vadd.f32 %v113, %v278
  %v280 = vpop.f32.mrf.mxu0
  %281 = vmatprep.mubr.f32.mxu0 0.0
  %v282 = vand.u32 %v156, 4294901760
  %v283 = vsub.f32 %v156, %v282
  %v284 = vand.u32 %v283, 4294901760
  %v285 = vsub.f32 %v283, %v284
  %v286 = vand.u32 %v285, 4294901760
  %287 = vmatmul.mubr.f32.gmra.mxu0 %v286
  %v288 = vpop.f32.mrf.mxu0
  %v289 = vadd.f32 %v114, %v288
  %v290 = vpop.f32.mrf.mxu0
  %291 = vmatprep.mubr.f32.mxu0 0.0
  %v292 = vand.u32 %v159, 4294901760
  %v293 = vsub.f32 %v159, %v292
  %v294 = vand.u32 %v293, 4294901760
  %v295 = vsub.f32 %v293, %v294
  %v296 = vand.u32 %v295, 4294901760
  %297 = vmatmul.mubr.f32.gmra.mxu0 %v296
  %v298 = vpop.f32.mrf.mxu0
  %v299 = vadd.f32 %v115, %v298
  %v300 = vpop.f32.mrf.mxu0
  %301 = vmatprep.mubr.f32.mxu0 0.0
  %v302 = vand.u32 %v162, 4294901760
  %v303 = vsub.f32 %v162, %v302
  %v304 = vand.u32 %v303, 4294901760
  %v305 = vsub.f32 %v303, %v304
  %v306 = vand.u32 %v305, 4294901760
  %307 = vmatmul.mubr.f32.gmra.mxu0 %v306
  %v308 = vpop.f32.mrf.mxu0
  %v309 = vadd.f32 %v116, %v308
  %v310 = vpop.f32.mrf.mxu0
  %311 = vmatprep.mubr.f32.mxu0 0.0
  %v312 = vand.u32 %v165, 4294901760
  %v313 = vsub.f32 %v165, %v312
  %v314 = vand.u32 %v313, 4294901760
  %v315 = vsub.f32 %v313, %v314
  %v316 = vand.u32 %v315, 4294901760
  %317 = vmatmul.mubr.f32.gmra.mxu0 %v316
  %v318 = vpop.f32.mrf.mxu0
  %v319 = vadd.f32 %v117, %v318
  %v320 = vpop.f32.mrf.mxu0
  %321 = vmatprep.mubr.f32.mxu0 0.0
  %v322 = vand.u32 %v168, 4294901760
  %v323 = vsub.f32 %v168, %v322
  %v324 = vand.u32 %v323, 4294901760
  %v325 = vsub.f32 %v323, %v324
  %v326 = vand.u32 %v325, 4294901760
  %327 = vmatmul.mubr.f32.gmra.mxu0 %v326
  %v328 = vpop.f32.mrf.mxu0
  %v329 = vadd.f32 %v147, %v328
  %v330 = vpop.f32.mrf.mxu0
  %331 = vmatprep.mubr.f32.mxu0 0.0
  %v332 = vand.u32 %v171, 4294901760
  %v333 = vsub.f32 %v171, %v332
  %v334 = vand.u32 %v333, 4294901760
  %v335 = vsub.f32 %v333, %v334
  %v336 = vand.u32 %v335, 4294901760
  %337 = vmatmul.mubr.f32.gmra.mxu0 %v336
  %v338 = vpop.f32.mrf.mxu0
  %v339 = vadd.f32 %v129, %v338
  %v340 = vpop.f32.mrf.mxu0
  %341 = vmatprep.mubr.f32.mxu0 0.0
  %v342 = vand.u32 %v174, 4294901760
  %v343 = vsub.f32 %v174, %v342
  %v344 = vand.u32 %v343, 4294901760
  %v345 = vsub.f32 %v343, %v344
  %v346 = vand.u32 %v345, 4294901760
  %347 = vmatmul.mubr.f32.gmra.mxu0 %v346
  %v348 = vpop.f32.mrf.mxu0
  %v349 = vadd.f32 %v131, %v348
  %v350 = vpop.f32.mrf.mxu0
  %351 = vmatprep.mubr.f32.mxu0 0.0
  %v352 = vand.u32 %v177, 4294901760
  %v353 = vsub.f32 %v177, %v352
  %v354 = vand.u32 %v353, 4294901760
  %v355 = vsub.f32 %v353, %v354
  %v356 = vand.u32 %v355, 4294901760
  %357 = vmatmul.mubr.f32.gmra.mxu0 %v356
  %v358 = vpop.f32.mrf.mxu0
  %v359 = vadd.f32 %v133, %v358
  %v360 = vpop.f32.mrf.mxu0
  %361 = vmatprep.mubr.f32.mxu0 0.0
  %v362 = vand.u32 %v180, 4294901760
  %v363 = vsub.f32 %v180, %v362
  %v364 = vand.u32 %v363, 4294901760
  %v365 = vsub.f32 %v363, %v364
  %v366 = vand.u32 %v365, 4294901760
  %367 = vmatmul.mubr.f32.gmra.mxu0 %v366
  %v368 = vpop.f32.mrf.mxu0
  %v369 = vadd.f32 %v135, %v368
  %v370 = vpop.f32.mrf.mxu0
  %371 = vmatprep.mubr.f32.mxu0 0.0
  %v372 = vand.u32 %v183, 4294901760
  %v373 = vsub.f32 %v183, %v372
  %v374 = vand.u32 %v373, 4294901760
  %v375 = vsub.f32 %v373, %v374
  %v376 = vand.u32 %v375, 4294901760
  %377 = vmatmul.mubr.f32.gmra.mxu0 %v376
  %v378 = vpop.f32.mrf.mxu0
  %v379 = vadd.f32 %v137, %v378
  %v380 = vpop.f32.mrf.mxu0
  %381 = vmatprep.mubr.f32.mxu0 0.0
  %v382 = vand.u32 %v186, 4294901760
  %v383 = vsub.f32 %v186, %v382
  %v384 = vand.u32 %v383, 4294901760
  %v385 = vsub.f32 %v383, %v384
  %v386 = vand.u32 %v385, 4294901760
  %387 = vmatmul.mubr.f32.gmra.mxu0 %v386
  %v388 = vpop.f32.mrf.mxu0
  %v389 = vadd.f32 %v139, %v388
  %v390 = vpop.f32.mrf.mxu0
  %391 = vdwg.mxu0
  %392 = vmatprep.subr.mxu0 0.0
  %393 = vmatpush1.msra.mxu0 0.0
  %394 = vmatprep.subr.mxu0 0.0
  %395 = vmatpush1.msra.mxu0 0.0
  %396 = vmatprep.subr.mxu0 0.0
  %397 = vmatpush1.msra.mxu0 0.0
  %398 = vmatprep.subr.mxu0 0.0
  %399 = vmatpush1.msra.mxu0 0.0
  %400 = vmatprep.subr.mxu0 0.0
  %401 = vmatpush1.msra.mxu0 0.0
  %402 = vmatprep.subr.mxu0 0.0
  %403 = vmatpush1.msra.mxu0 0.0
  %404 = vmatprep.subr.mxu0 0.0
  %405 = vmatpush1.msra.mxu0 0.0
  %406 = vmatprep.subr.mxu0 0.0
  %407 = vmatpush1.msra.mxu0 0.0
  %408 = vmatprep.subr.mxu0 0.0
  %409 = vmatpush1.msra.mxu0 0.0
  %410 = vmatprep.subr.mxu0 0.0
  %411 = vmatpush1.msra.mxu0 0.0
  %412 = vmatprep.subr.mxu0 0.0
  %413 = vmatpush1.msra.mxu0 0.0
  %414 = vmatprep.subr.mxu0 0.0
  %v415 = vand.u32 %v190, 4294901760
  %v416 = vsub.f32 %v190, %v415
  %v417 = vand.u32 %v416, 4294901760
  %v418 = vsub.f32 %v416, %v417
  %v419 = vand.u32 %v418, 4294901760
  %420 = vmatpush1.msra.mxu0 %v419
  %421 = vmatprep.subr.mxu0 0.0
  %v422 = vand.u32 %v110, 4294901760
  %v423 = vsub.f32 %v110, %v422
  %v424 = vand.u32 %v423, 4294901760
  %v425 = vsub.f32 %v423, %v424
  %v426 = vand.u32 %v425, 4294901760
  %427 = vmatpush1.msra.mxu0 %v426
  %428 = vmatprep.subr.mxu0 0.0
  %v429 = vand.u32 %v109, 4294901760
  %v430 = vsub.f32 %v109, %v429
  %v431 = vand.u32 %v430, 4294901760
  %v432 = vsub.f32 %v430, %v431
  %v433 = vand.u32 %v432, 4294901760
  %434 = vmatpush1.msra.mxu0 %v433
  %435 = vmatprep.subr.mxu0 0.0
  %v436 = vand.u32 %v108, 4294901760
  %v437 = vsub.f32 %v108, %v436
  %v438 = vand.u32 %v437, 4294901760
  %v439 = vsub.f32 %v437, %v438
  %v440 = vand.u32 %v439, 4294901760
  %441 = vmatpush1.msra.mxu0 %v440
  %442 = vmatprep.subr.mxu0 0.0
  %v443 = vand.u32 %v107, 4294901760
  %v444 = vsub.f32 %v107, %v443
  %v445 = vand.u32 %v444, 4294901760
  %v446 = vsub.f32 %v444, %v445
  %v447 = vand.u32 %v446, 4294901760
  %448 = vmatpush1.msra.mxu0 %v447
  %449 = vmatprep.subr.mxu0 0.0
  %450 = vmatpush2.msra.mxu0 0.0
  %451 = vmatprep.subr.mxu0 0.0
  %452 = vmatpush2.msra.mxu0 0.0
  %453 = vmatprep.subr.mxu0 0.0
  %454 = vmatpush2.msra.mxu0 0.0
  %455 = vmatprep.subr.mxu0 0.0
  %456 = vmatpush2.msra.mxu0 0.0
  %457 = vmatprep.subr.mxu0 0.0
  %458 = vmatpush2.msra.mxu0 0.0
  %459 = vmatprep.subr.mxu0 0.0
  %460 = vmatpush2.msra.mxu0 0.0
  %461 = vmatprep.subr.mxu0 0.0
  %462 = vmatpush2.msra.mxu0 0.0
  %463 = vmatprep.subr.mxu0 0.0
  %464 = vmatpush2.msra.mxu0 0.0
  %465 = vmatprep.subr.mxu0 0.0
  %466 = vmatpush2.msra.mxu0 0.0
  %467 = vmatprep.subr.mxu0 0.0
  %468 = vmatpush2.msra.mxu0 0.0
  %469 = vmatprep.subr.mxu0 0.0
  %470 = vmatpush2.msra.mxu0 0.0
  %471 = vmatprep.subr.mxu0 0.0
  %472 = vmatpush2.msra.mxu0 0.0
  %473 = vmatprep.subr.mxu0 0.0
  %474 = vmatpush2.msra.mxu0 0.0
  %475 = vmatprep.subr.mxu0 0.0
  %476 = vmatpush2.msra.mxu0 0.0
  %477 = vmatprep.subr.mxu0 0.0
  %478 = vmatpush2.msra.mxu0 0.0
  %479 = vmatprep.subr.mxu0 0.0
  %480 = vmatpush2.msra.mxu0 0.0
  %481 = vmatprep.mubr.f32.mxu0 0.0
  %v482 = vand.u32 %v150, 4294901760
  %483 = vmatmul.mubr.f32.gmra.mxu0 %v482
  %v484 = vpop.f32.mrf.mxu0
  %v485 = vadd.f32 %v269, %v484
  %v486 = vpop.f32.mrf.mxu0
  %487 = vmatprep.mubr.f32.mxu0 0.0
  %v488 = vand.u32 %v153, 4294901760
  %489 = vmatmul.mubr.f32.gmra.mxu0 %v488
  %v490 = vpop.f32.mrf.mxu0
  %v491 = vadd.f32 %v279, %v490
  %v492 = vpop.f32.mrf.mxu0
  %493 = vmatprep.mubr.f32.mxu0 0.0
  %v494 = vand.u32 %v156, 4294901760
  %495 = vmatmul.mubr.f32.gmra.mxu0 %v494
  %v496 = vpop.f32.mrf.mxu0
  %v497 = vadd.f32 %v289, %v496
  %v498 = vpop.f32.mrf.mxu0
  %499 = vmatprep.mubr.f32.mxu0 0.0
  %v500 = vand.u32 %v159, 4294901760
  %501 = vmatmul.mubr.f32.gmra.mxu0 %v500
  %v502 = vpop.f32.mrf.mxu0
  %v503 = vadd.f32 %v299, %v502
  %v504 = vpop.f32.mrf.mxu0
  %505 = vmatprep.mubr.f32.mxu0 0.0
  %v506 = vand.u32 %v162, 4294901760
  %507 = vmatmul.mubr.f32.gmra.mxu0 %v506
  %v508 = vpop.f32.mrf.mxu0
  %v509 = vadd.f32 %v309, %v508
  %v510 = vpop.f32.mrf.mxu0
  %511 = vmatprep.mubr.f32.mxu0 0.0
  %v512 = vand.u32 %v165, 4294901760
  %513 = vmatmul.mubr.f32.gmra.mxu0 %v512
  %v514 = vpop.f32.mrf.mxu0
  %v515 = vadd.f32 %v319, %v514
  %v516 = vpop.f32.mrf.mxu0
  %517 = vmatprep.mubr.f32.mxu0 0.0
  %v518 = vand.u32 %v168, 4294901760
  %519 = vmatmul.mubr.f32.gmra.mxu0 %v518
  %v520 = vpop.f32.mrf.mxu0
  %v521 = vadd.f32 %v329, %v520
  %v522 = vpop.f32.mrf.mxu0
  %523 = vmatprep.mubr.f32.mxu0 0.0
  %v524 = vand.u32 %v171, 4294901760
  %525 = vmatmul.mubr.f32.gmra.mxu0 %v524
  %v526 = vpop.f32.mrf.mxu0
  %v527 = vadd.f32 %v339, %v526
  %v528 = vpop.f32.mrf.mxu0
  %529 = vmatprep.mubr.f32.mxu0 0.0
  %v530 = vand.u32 %v174, 4294901760
  %531 = vmatmul.mubr.f32.gmra.mxu0 %v530
  %v532 = vpop.f32.mrf.mxu0
  %v533 = vadd.f32 %v349, %v532
  %v534 = vpop.f32.mrf.mxu0
  %535 = vmatprep.mubr.f32.mxu0 0.0
  %v536 = vand.u32 %v177, 4294901760
  %537 = vmatmul.mubr.f32.gmra.mxu0 %v536
  %v538 = vpop.f32.mrf.mxu0
  %v539 = vadd.f32 %v359, %v538
  %v540 = vpop.f32.mrf.mxu0
  %541 = vmatprep.mubr.f32.mxu0 0.0
  %v542 = vand.u32 %v180, 4294901760
  %543 = vmatmul.mubr.f32.gmra.mxu0 %v542
  %v544 = vpop.f32.mrf.mxu0
  %v545 = vadd.f32 %v369, %v544
  %v546 = vpop.f32.mrf.mxu0
  %547 = vmatprep.mubr.f32.mxu0 0.0
  %v548 = vand.u32 %v183, 4294901760
  %549 = vmatmul.mubr.f32.gmra.mxu0 %v548
  %v550 = vpop.f32.mrf.mxu0
  %v551 = vadd.f32 %v379, %v550
  %v552 = vpop.f32.mrf.mxu0
  %553 = vmatprep.mubr.f32.mxu0 0.0
  %v554 = vand.u32 %v186, 4294901760
  %555 = vmatmul.mubr.f32.gmra.mxu0 %v554
  %v556 = vpop.f32.mrf.mxu0
  %v557 = vadd.f32 %v389, %v556
  %v558 = vpop.f32.mrf.mxu0
  %559 = vdwg.mxu0
  %560 = vmatprep.subr.mxu0 0.0
  %561 = vmatpush1.msra.mxu0 0.0
  %562 = vmatprep.subr.mxu0 0.0
  %563 = vmatpush1.msra.mxu0 0.0
  %564 = vmatprep.subr.mxu0 0.0
  %565 = vmatpush1.msra.mxu0 0.0
  %566 = vmatprep.subr.mxu0 0.0
  %567 = vmatpush1.msra.mxu0 0.0
  %568 = vmatprep.subr.mxu0 0.0
  %569 = vmatpush1.msra.mxu0 0.0
  %570 = vmatprep.subr.mxu0 0.0
  %571 = vmatpush1.msra.mxu0 0.0
  %572 = vmatprep.subr.mxu0 0.0
  %573 = vmatpush1.msra.mxu0 0.0
  %574 = vmatprep.subr.mxu0 0.0
  %575 = vmatpush1.msra.mxu0 0.0
  %576 = vmatprep.subr.mxu0 0.0
  %577 = vmatpush1.msra.mxu0 0.0
  %578 = vmatprep.subr.mxu0 0.0
  %579 = vmatpush1.msra.mxu0 0.0
  %580 = vmatprep.subr.mxu0 0.0
  %581 = vmatpush1.msra.mxu0 0.0
  %582 = vmatprep.subr.mxu0 0.0
  %v583 = vand.u32 %v190, 4294901760
  %v584 = vsub.f32 %v190, %v583
  %585 = vmatpush1.msra.mxu0 %v584
  %586 = vmatprep.subr.mxu0 0.0
  %v587 = vand.u32 %v110, 4294901760
  %v588 = vsub.f32 %v110, %v587
  %589 = vmatpush1.msra.mxu0 %v588
  %590 = vmatprep.subr.mxu0 0.0
  %v591 = vand.u32 %v109, 4294901760
  %v592 = vsub.f32 %v109, %v591
  %593 = vmatpush1.msra.mxu0 %v592
  %594 = vmatprep.subr.mxu0 0.0
  %v595 = vand.u32 %v108, 4294901760
  %v596 = vsub.f32 %v108, %v595
  %597 = vmatpush1.msra.mxu0 %v596
  %598 = vmatprep.subr.mxu0 0.0
  %v599 = vand.u32 %v107, 4294901760
  %v600 = vsub.f32 %v107, %v599
  %601 = vmatpush1.msra.mxu0 %v600
  %602 = vmatprep.subr.mxu0 0.0
  %603 = vmatpush2.msra.mxu0 0.0
  %604 = vmatprep.subr.mxu0 0.0
  %605 = vmatpush2.msra.mxu0 0.0
  %606 = vmatprep.subr.mxu0 0.0
  %607 = vmatpush2.msra.mxu0 0.0
  %608 = vmatprep.subr.mxu0 0.0
  %609 = vmatpush2.msra.mxu0 0.0
  %610 = vmatprep.subr.mxu0 0.0
  %611 = vmatpush2.msra.mxu0 0.0
  %612 = vmatprep.subr.mxu0 0.0
  %613 = vmatpush2.msra.mxu0 0.0
  %614 = vmatprep.subr.mxu0 0.0
  %615 = vmatpush2.msra.mxu0 0.0
  %616 = vmatprep.subr.mxu0 0.0
  %617 = vmatpush2.msra.mxu0 0.0
  %618 = vmatprep.subr.mxu0 0.0
  %619 = vmatpush2.msra.mxu0 0.0
  %620 = vmatprep.subr.mxu0 0.0
  %621 = vmatpush2.msra.mxu0 0.0
  %622 = vmatprep.subr.mxu0 0.0
  %623 = vmatpush2.msra.mxu0 0.0
  %624 = vmatprep.subr.mxu0 0.0
  %625 = vmatpush2.msra.mxu0 0.0
  %626 = vmatprep.subr.mxu0 0.0
  %627 = vmatpush2.msra.mxu0 0.0
  %628 = vmatprep.subr.mxu0 0.0
  %629 = vmatpush2.msra.mxu0 0.0
  %630 = vmatprep.subr.mxu0 0.0
  %631 = vmatpush2.msra.mxu0 0.0
  %632 = vmatprep.subr.mxu0 0.0
  %633 = vmatpush2.msra.mxu0 0.0
  %634 = vmatprep.mubr.f32.mxu0 0.0
  %v635 = vand.u32 %v150, 4294901760
  %v636 = vsub.f32 %v150, %v635
  %637 = vmatmul.mubr.f32.gmra.mxu0 %v636
  %v638 = vpop.f32.mrf.mxu0
  %v639 = vadd.f32 %v485, %v638
  %v640 = vpop.f32.mrf.mxu0
  %641 = vmatprep.mubr.f32.mxu0 0.0
  %v642 = vand.u32 %v153, 4294901760
  %v643 = vsub.f32 %v153, %v642
  %644 = vmatmul.mubr.f32.gmra.mxu0 %v643
  %v645 = vpop.f32.mrf.mxu0
  %v646 = vadd.f32 %v491, %v645
  %v647 = vpop.f32.mrf.mxu0
  %648 = vmatprep.mubr.f32.mxu0 0.0
  %v649 = vand.u32 %v156, 4294901760
  %v650 = vsub.f32 %v156, %v649
  %651 = vmatmul.mubr.f32.gmra.mxu0 %v650
  %v652 = vpop.f32.mrf.mxu0
  %v653 = vadd.f32 %v497, %v652
  %v654 = vpop.f32.mrf.mxu0
  %655 = vmatprep.mubr.f32.mxu0 0.0
  %v656 = vand.u32 %v159, 4294901760
  %v657 = vsub.f32 %v159, %v656
  %658 = vmatmul.mubr.f32.gmra.mxu0 %v657
  %v659 = vpop.f32.mrf.mxu0
  %v660 = vadd.f32 %v503, %v659
  %v661 = vpop.f32.mrf.mxu0
  %662 = vmatprep.mubr.f32.mxu0 0.0
  %v663 = vand.u32 %v162, 4294901760
  %v664 = vsub.f32 %v162, %v663
  %665 = vmatmul.mubr.f32.gmra.mxu0 %v664
  %v666 = vpop.f32.mrf.mxu0
  %v667 = vadd.f32 %v509, %v666
  %v668 = vpop.f32.mrf.mxu0
  %669 = vmatprep.mubr.f32.mxu0 0.0
  %v670 = vand.u32 %v165, 4294901760
  %v671 = vsub.f32 %v165, %v670
  %672 = vmatmul.mubr.f32.gmra.mxu0 %v671
  %v673 = vpop.f32.mrf.mxu0
  %v674 = vadd.f32 %v515, %v673
  %v675 = vpop.f32.mrf.mxu0
  %676 = vmatprep.mubr.f32.mxu0 0.0
  %v677 = vand.u32 %v168, 4294901760
  %v678 = vsub.f32 %v168, %v677
  %679 = vmatmul.mubr.f32.gmra.mxu0 %v678
  %v680 = vpop.f32.mrf.mxu0
  %v681 = vadd.f32 %v521, %v680
  %v682 = vpop.f32.mrf.mxu0
  %683 = vmatprep.mubr.f32.mxu0 0.0
  %v684 = vand.u32 %v171, 4294901760
  %v685 = vsub.f32 %v171, %v684
  %686 = vmatmul.mubr.f32.gmra.mxu0 %v685
  %v687 = vpop.f32.mrf.mxu0
  %v688 = vadd.f32 %v527, %v687
  %v689 = vpop.f32.mrf.mxu0
  %690 = vmatprep.mubr.f32.mxu0 0.0
  %v691 = vand.u32 %v174, 4294901760
  %v692 = vsub.f32 %v174, %v691
  %693 = vmatmul.mubr.f32.gmra.mxu0 %v692
  %v694 = vpop.f32.mrf.mxu0
  %v695 = vadd.f32 %v533, %v694
  %v696 = vpop.f32.mrf.mxu0
  %697 = vmatprep.mubr.f32.mxu0 0.0
  %v698 = vand.u32 %v177, 4294901760
  %v699 = vsub.f32 %v177, %v698
  %700 = vmatmul.mubr.f32.gmra.mxu0 %v699
  %v701 = vpop.f32.mrf.mxu0
  %v702 = vadd.f32 %v539, %v701
  %v703 = vpop.f32.mrf.mxu0
  %704 = vmatprep.mubr.f32.mxu0 0.0
  %v705 = vand.u32 %v180, 4294901760
  %v706 = vsub.f32 %v180, %v705
  %707 = vmatmul.mubr.f32.gmra.mxu0 %v706
  %v708 = vpop.f32.mrf.mxu0
  %v709 = vadd.f32 %v545, %v708
  %v710 = vpop.f32.mrf.mxu0
  %711 = vmatprep.mubr.f32.mxu0 0.0
  %v712 = vand.u32 %v183, 4294901760
  %v713 = vsub.f32 %v183, %v712
  %714 = vmatmul.mubr.f32.gmra.mxu0 %v713
  %v715 = vpop.f32.mrf.mxu0
  %v716 = vadd.f32 %v551, %v715
  %v717 = vpop.f32.mrf.mxu0
  %718 = vmatprep.mubr.f32.mxu0 0.0
  %v719 = vand.u32 %v186, 4294901760
  %v720 = vsub.f32 %v186, %v719
  %721 = vmatmul.mubr.f32.gmra.mxu0 %v720
  %v722 = vpop.f32.mrf.mxu0
  %v723 = vadd.f32 %v557, %v722
  %v724 = vpop.f32.mrf.mxu0
  %725 = vdwg.mxu0
  %726 = vmatprep.subr.mxu0 0.0
  %727 = vmatpush1.msra.mxu0 0.0
  %728 = vmatprep.subr.mxu0 0.0
  %729 = vmatpush1.msra.mxu0 0.0
  %730 = vmatprep.subr.mxu0 0.0
  %731 = vmatpush1.msra.mxu0 0.0
  %732 = vmatprep.subr.mxu0 0.0
  %733 = vmatpush1.msra.mxu0 0.0
  %734 = vmatprep.subr.mxu0 0.0
  %735 = vmatpush1.msra.mxu0 0.0
  %736 = vmatprep.subr.mxu0 0.0
  %737 = vmatpush1.msra.mxu0 0.0
  %738 = vmatprep.subr.mxu0 0.0
  %739 = vmatpush1.msra.mxu0 0.0
  %740 = vmatprep.subr.mxu0 0.0
  %741 = vmatpush1.msra.mxu0 0.0
  %742 = vmatprep.subr.mxu0 0.0
  %743 = vmatpush1.msra.mxu0 0.0
  %744 = vmatprep.subr.mxu0 0.0
  %745 = vmatpush1.msra.mxu0 0.0
  %746 = vmatprep.subr.mxu0 0.0
  %747 = vmatpush1.msra.mxu0 0.0
  %748 = vmatprep.subr.mxu0 0.0
  %v749 = vand.u32 %v190, 4294901760
  %750 = vmatpush1.msra.mxu0 %v749
  %751 = vmatprep.subr.mxu0 0.0
  %v752 = vand.u32 %v110, 4294901760
  %753 = vmatpush1.msra.mxu0 %v752
  %754 = vmatprep.subr.mxu0 0.0
  %v755 = vand.u32 %v109, 4294901760
  %756 = vmatpush1.msra.mxu0 %v755
  %757 = vmatprep.subr.mxu0 0.0
  %v758 = vand.u32 %v108, 4294901760
  %759 = vmatpush1.msra.mxu0 %v758
  %760 = vmatprep.subr.mxu0 0.0
  %v761 = vand.u32 %v107, 4294901760
  %762 = vmatpush1.msra.mxu0 %v761
  %763 = vmatprep.subr.mxu0 0.0
  %764 = vmatpush2.msra.mxu0 0.0
  %765 = vmatprep.subr.mxu0 0.0
  %766 = vmatpush2.msra.mxu0 0.0
  %767 = vmatprep.subr.mxu0 0.0
  %768 = vmatpush2.msra.mxu0 0.0
  %769 = vmatprep.subr.mxu0 0.0
  %770 = vmatpush2.msra.mxu0 0.0
  %771 = vmatprep.subr.mxu0 0.0
  %772 = vmatpush2.msra.mxu0 0.0
  %773 = vmatprep.subr.mxu0 0.0
  %774 = vmatpush2.msra.mxu0 0.0
  %775 = vmatprep.subr.mxu0 0.0
  %776 = vmatpush2.msra.mxu0 0.0
  %777 = vmatprep.subr.mxu0 0.0
  %778 = vmatpush2.msra.mxu0 0.0
  %779 = vmatprep.subr.mxu0 0.0
  %780 = vmatpush2.msra.mxu0 0.0
  %781 = vmatprep.subr.mxu0 0.0
  %782 = vmatpush2.msra.mxu0 0.0
  %783 = vmatprep.subr.mxu0 0.0
  %784 = vmatpush2.msra.mxu0 0.0
  %785 = vmatprep.subr.mxu0 0.0
  %786 = vmatpush2.msra.mxu0 0.0
  %787 = vmatprep.subr.mxu0 0.0
  %788 = vmatpush2.msra.mxu0 0.0
  %789 = vmatprep.subr.mxu0 0.0
  %790 = vmatpush2.msra.mxu0 0.0
  %791 = vmatprep.subr.mxu0 0.0
  %792 = vmatpush2.msra.mxu0 0.0
  %793 = vmatprep.subr.mxu0 0.0
  %794 = vmatpush2.msra.mxu0 0.0
  %795 = vmatprep.mubr.f32.mxu0 0.0
  %v796 = vand.u32 %v150, 4294901760
  %v797 = vsub.f32 %v150, %v796
  %v798 = vand.u32 %v797, 4294901760
  %799 = vmatmul.mubr.f32.gmra.mxu0 %v798
  %v800 = vpop.f32.mrf.mxu0
  %v801 = vadd.f32 %v639, %v800
  %v802 = vpop.f32.mrf.mxu0
  %803 = vmatprep.mubr.f32.mxu0 0.0
  %v804 = vand.u32 %v153, 4294901760
  %v805 = vsub.f32 %v153, %v804
  %v806 = vand.u32 %v805, 4294901760
  %807 = vmatmul.mubr.f32.gmra.mxu0 %v806
  %v808 = vpop.f32.mrf.mxu0
  %v809 = vadd.f32 %v646, %v808
  %v810 = vpop.f32.mrf.mxu0
  %811 = vmatprep.mubr.f32.mxu0 0.0
  %v812 = vand.u32 %v156, 4294901760
  %v813 = vsub.f32 %v156, %v812
  %v814 = vand.u32 %v813, 4294901760
  %815 = vmatmul.mubr.f32.gmra.mxu0 %v814
  %v816 = vpop.f32.mrf.mxu0
  %v817 = vadd.f32 %v653, %v816
  %v818 = vpop.f32.mrf.mxu0
  %819 = vmatprep.mubr.f32.mxu0 0.0
  %v820 = vand.u32 %v159, 4294901760
  %v821 = vsub.f32 %v159, %v820
  %v822 = vand.u32 %v821, 4294901760
  %823 = vmatmul.mubr.f32.gmra.mxu0 %v822
  %v824 = vpop.f32.mrf.mxu0
  %v825 = vadd.f32 %v660, %v824
  %v826 = vpop.f32.mrf.mxu0
  %827 = vmatprep.mubr.f32.mxu0 0.0
  %v828 = vand.u32 %v162, 4294901760
  %v829 = vsub.f32 %v162, %v828
  %v830 = vand.u32 %v829, 4294901760
  %831 = vmatmul.mubr.f32.gmra.mxu0 %v830
  %v832 = vpop.f32.mrf.mxu0
  %v833 = vadd.f32 %v667, %v832
  %v834 = vpop.f32.mrf.mxu0
  %835 = vmatprep.mubr.f32.mxu0 0.0
  %v836 = vand.u32 %v165, 4294901760
  %v837 = vsub.f32 %v165, %v836
  %v838 = vand.u32 %v837, 4294901760
  %839 = vmatmul.mubr.f32.gmra.mxu0 %v838
  %v840 = vpop.f32.mrf.mxu0
  %v841 = vadd.f32 %v674, %v840
  %v842 = vpop.f32.mrf.mxu0
  %843 = vmatprep.mubr.f32.mxu0 0.0
  %v844 = vand.u32 %v168, 4294901760
  %v845 = vsub.f32 %v168, %v844
  %v846 = vand.u32 %v845, 4294901760
  %847 = vmatmul.mubr.f32.gmra.mxu0 %v846
  %v848 = vpop.f32.mrf.mxu0
  %v849 = vadd.f32 %v681, %v848
  %v850 = vpop.f32.mrf.mxu0
  %851 = vmatprep.mubr.f32.mxu0 0.0
  %v852 = vand.u32 %v171, 4294901760
  %v853 = vsub.f32 %v171, %v852
  %v854 = vand.u32 %v853, 4294901760
  %855 = vmatmul.mubr.f32.gmra.mxu0 %v854
  %v856 = vpop.f32.mrf.mxu0
  %v857 = vadd.f32 %v688, %v856
  %v858 = vpop.f32.mrf.mxu0
  %859 = vmatprep.mubr.f32.mxu0 0.0
  %v860 = vand.u32 %v174, 4294901760
  %v861 = vsub.f32 %v174, %v860
  %v862 = vand.u32 %v861, 4294901760
  %863 = vmatmul.mubr.f32.gmra.mxu0 %v862
  %v864 = vpop.f32.mrf.mxu0
  %v865 = vadd.f32 %v695, %v864
  %v866 = vpop.f32.mrf.mxu0
  %867 = vmatprep.mubr.f32.mxu0 0.0
  %v868 = vand.u32 %v177, 4294901760
  %v869 = vsub.f32 %v177, %v868
  %v870 = vand.u32 %v869, 4294901760
  %871 = vmatmul.mubr.f32.gmra.mxu0 %v870
  %v872 = vpop.f32.mrf.mxu0
  %v873 = vadd.f32 %v702, %v872
  %v874 = vpop.f32.mrf.mxu0
  %875 = vmatprep.mubr.f32.mxu0 0.0
  %v876 = vand.u32 %v180, 4294901760
  %v877 = vsub.f32 %v180, %v876
  %v878 = vand.u32 %v877, 4294901760
  %879 = vmatmul.mubr.f32.gmra.mxu0 %v878
  %v880 = vpop.f32.mrf.mxu0
  %v881 = vadd.f32 %v709, %v880
  %v882 = vpop.f32.mrf.mxu0
  %883 = vmatprep.mubr.f32.mxu0 0.0
  %v884 = vand.u32 %v183, 4294901760
  %v885 = vsub.f32 %v183, %v884
  %v886 = vand.u32 %v885, 4294901760
  %887 = vmatmul.mubr.f32.gmra.mxu0 %v886
  %v888 = vpop.f32.mrf.mxu0
  %v889 = vadd.f32 %v716, %v888
  %v890 = vpop.f32.mrf.mxu0
  %891 = vmatprep.mubr.f32.mxu0 0.0
  %v892 = vand.u32 %v186, 4294901760
  %v893 = vsub.f32 %v186, %v892
  %v894 = vand.u32 %v893, 4294901760
  %895 = vmatmul.mubr.f32.gmra.mxu0 %v894
  %v896 = vpop.f32.mrf.mxu0
  %v897 = vadd.f32 %v723, %v896
  %v898 = vpop.f32.mrf.mxu0
  %899 = vdwg.mxu0
  %900 = vmatprep.subr.mxu0 0.0
  %901 = vmatpush1.msra.mxu0 0.0
  %902 = vmatprep.subr.mxu0 0.0
  %903 = vmatpush1.msra.mxu0 0.0
  %904 = vmatprep.subr.mxu0 0.0
  %905 = vmatpush1.msra.mxu0 0.0
  %906 = vmatprep.subr.mxu0 0.0
  %907 = vmatpush1.msra.mxu0 0.0
  %908 = vmatprep.subr.mxu0 0.0
  %909 = vmatpush1.msra.mxu0 0.0
  %910 = vmatprep.subr.mxu0 0.0
  %911 = vmatpush1.msra.mxu0 0.0
  %912 = vmatprep.subr.mxu0 0.0
  %913 = vmatpush1.msra.mxu0 0.0
  %914 = vmatprep.subr.mxu0 0.0
  %915 = vmatpush1.msra.mxu0 0.0
  %916 = vmatprep.subr.mxu0 0.0
  %917 = vmatpush1.msra.mxu0 0.0
  %918 = vmatprep.subr.mxu0 0.0
  %919 = vmatpush1.msra.mxu0 0.0
  %920 = vmatprep.subr.mxu0 0.0
  %921 = vmatpush1.msra.mxu0 0.0
  %922 = vmatprep.subr.mxu0 0.0
  %v923 = vand.u32 %v190, 4294901760
  %v924 = vsub.f32 %v190, %v923
  %v925 = vand.u32 %v924, 4294901760
  %926 = vmatpush1.msra.mxu0 %v925
  %927 = vmatprep.subr.mxu0 0.0
  %v928 = vand.u32 %v110, 4294901760
  %v929 = vsub.f32 %v110, %v928
  %v930 = vand.u32 %v929, 4294901760
  %931 = vmatpush1.msra.mxu0 %v930
  %932 = vmatprep.subr.mxu0 0.0
  %v933 = vand.u32 %v109, 4294901760
  %v934 = vsub.f32 %v109, %v933
  %v935 = vand.u32 %v934, 4294901760
  %936 = vmatpush1.msra.mxu0 %v935
  %937 = vmatprep.subr.mxu0 0.0
  %v938 = vand.u32 %v108, 4294901760
  %v939 = vsub.f32 %v108, %v938
  %v940 = vand.u32 %v939, 4294901760
  %941 = vmatpush1.msra.mxu0 %v940
  %942 = vmatprep.subr.mxu0 0.0
  %v943 = vand.u32 %v107, 4294901760
  %v944 = vsub.f32 %v107, %v943
  %v945 = vand.u32 %v944, 4294901760
  %946 = vmatpush1.msra.mxu0 %v945
  %947 = vmatprep.subr.mxu0 0.0
  %948 = vmatpush2.msra.mxu0 0.0
  %949 = vmatprep.subr.mxu0 0.0
  %950 = vmatpush2.msra.mxu0 0.0
  %951 = vmatprep.subr.mxu0 0.0
  %952 = vmatpush2.msra.mxu0 0.0
  %953 = vmatprep.subr.mxu0 0.0
  %954 = vmatpush2.msra.mxu0 0.0
  %955 = vmatprep.subr.mxu0 0.0
  %956 = vmatpush2.msra.mxu0 0.0
  %957 = vmatprep.subr.mxu0 0.0
  %958 = vmatpush2.msra.mxu0 0.0
  %959 = vmatprep.subr.mxu0 0.0
  %960 = vmatpush2.msra.mxu0 0.0
  %961 = vmatprep.subr.mxu0 0.0
  %962 = vmatpush2.msra.mxu0 0.0
  %963 = vmatprep.subr.mxu0 0.0
  %964 = vmatpush2.msra.mxu0 0.0
  %965 = vmatprep.subr.mxu0 0.0
  %966 = vmatpush2.msra.mxu0 0.0
  %967 = vmatprep.subr.mxu0 0.0
  %968 = vmatpush2.msra.mxu0 0.0
  %969 = vmatprep.subr.mxu0 0.0
  %970 = vmatpush2.msra.mxu0 0.0
  %971 = vmatprep.subr.mxu0 0.0
  %972 = vmatpush2.msra.mxu0 0.0
  %973 = vmatprep.subr.mxu0 0.0
  %974 = vmatpush2.msra.mxu0 0.0
  %975 = vmatprep.subr.mxu0 0.0
  %976 = vmatpush2.msra.mxu0 0.0
  %977 = vmatprep.subr.mxu0 0.0
  %978 = vmatpush2.msra.mxu0 0.0
  %979 = vmatprep.mubr.f32.mxu0 0.0
  %v980 = vand.u32 %v150, 4294901760
  %981 = vmatmul.mubr.f32.gmra.mxu0 %v980
  %v982 = vpop.f32.mrf.mxu0
  %v983 = vadd.f32 %v801, %v982
  %v984 = vpop.f32.mrf.mxu0
  %985 = vmatprep.mubr.f32.mxu0 0.0
  %v986 = vand.u32 %v153, 4294901760
  %987 = vmatmul.mubr.f32.gmra.mxu0 %v986
  %v988 = vpop.f32.mrf.mxu0
  %v989 = vadd.f32 %v809, %v988
  %v990 = vpop.f32.mrf.mxu0
  %991 = vmatprep.mubr.f32.mxu0 0.0
  %v992 = vand.u32 %v156, 4294901760
  %993 = vmatmul.mubr.f32.gmra.mxu0 %v992
  %v994 = vpop.f32.mrf.mxu0
  %v995 = vadd.f32 %v817, %v994
  %v996 = vpop.f32.mrf.mxu0
  %997 = vmatprep.mubr.f32.mxu0 0.0
  %v998 = vand.u32 %v159, 4294901760
  %999 = vmatmul.mubr.f32.gmra.mxu0 %v998
  %v1000 = vpop.f32.mrf.mxu0
  %v1001 = vadd.f32 %v825, %v1000
  %v1002 = vpop.f32.mrf.mxu0
  %1003 = vmatprep.mubr.f32.mxu0 0.0
  %v1004 = vand.u32 %v162, 4294901760
  %1005 = vmatmul.mubr.f32.gmra.mxu0 %v1004
  %v1006 = vpop.f32.mrf.mxu0
  %v1007 = vadd.f32 %v833, %v1006
  %v1008 = vpop.f32.mrf.mxu0
  %1009 = vmatprep.mubr.f32.mxu0 0.0
  %v1010 = vand.u32 %v165, 4294901760
  %1011 = vmatmul.mubr.f32.gmra.mxu0 %v1010
  %v1012 = vpop.f32.mrf.mxu0
  %v1013 = vadd.f32 %v841, %v1012
  %v1014 = vpop.f32.mrf.mxu0
  %1015 = vmatprep.mubr.f32.mxu0 0.0
  %v1016 = vand.u32 %v168, 4294901760
  %1017 = vmatmul.mubr.f32.gmra.mxu0 %v1016
  %v1018 = vpop.f32.mrf.mxu0
  %v1019 = vadd.f32 %v849, %v1018
  %v1020 = vpop.f32.mrf.mxu0
  %1021 = vmatprep.mubr.f32.mxu0 0.0
  %v1022 = vand.u32 %v171, 4294901760
  %1023 = vmatmul.mubr.f32.gmra.mxu0 %v1022
  %v1024 = vpop.f32.mrf.mxu0
  %v1025 = vadd.f32 %v857, %v1024
  %v1026 = vpop.f32.mrf.mxu0
  %1027 = vmatprep.mubr.f32.mxu0 0.0
  %v1028 = vand.u32 %v174, 4294901760
  %1029 = vmatmul.mubr.f32.gmra.mxu0 %v1028
  %v1030 = vpop.f32.mrf.mxu0
  %v1031 = vadd.f32 %v865, %v1030
  %v1032 = vpop.f32.mrf.mxu0
  %1033 = vmatprep.mubr.f32.mxu0 0.0
  %v1034 = vand.u32 %v177, 4294901760
  %1035 = vmatmul.mubr.f32.gmra.mxu0 %v1034
  %v1036 = vpop.f32.mrf.mxu0
  %v1037 = vadd.f32 %v873, %v1036
  %v1038 = vpop.f32.mrf.mxu0
  %1039 = vmatprep.mubr.f32.mxu0 0.0
  %v1040 = vand.u32 %v180, 4294901760
  %1041 = vmatmul.mubr.f32.gmra.mxu0 %v1040
  %v1042 = vpop.f32.mrf.mxu0
  %v1043 = vadd.f32 %v881, %v1042
  %v1044 = vpop.f32.mrf.mxu0
  %1045 = vmatprep.mubr.f32.mxu0 0.0
  %v1046 = vand.u32 %v183, 4294901760
  %1047 = vmatmul.mubr.f32.gmra.mxu0 %v1046
  %v1048 = vpop.f32.mrf.mxu0
  %v1049 = vadd.f32 %v889, %v1048
  %v1050 = vpop.f32.mrf.mxu0
  %1051 = vmatprep.mubr.f32.mxu0 0.0
  %v1052 = vand.u32 %v186, 4294901760
  %1053 = vmatmul.mubr.f32.gmra.mxu0 %v1052
  %v1054 = vpop.f32.mrf.mxu0
  %v1055 = vadd.f32 %v897, %v1054
  %v1056 = vpop.f32.mrf.mxu0
  %1057 = vdwg.mxu0
  %1058 = vmatprep.subr.mxu0 0.0
  %1059 = vmatpush1.msra.mxu0 0.0
  %1060 = vmatprep.subr.mxu0 0.0
  %1061 = vmatpush1.msra.mxu0 0.0
  %1062 = vmatprep.subr.mxu0 0.0
  %1063 = vmatpush1.msra.mxu0 0.0
  %1064 = vmatprep.subr.mxu0 0.0
  %1065 = vmatpush1.msra.mxu0 0.0
  %1066 = vmatprep.subr.mxu0 0.0
  %1067 = vmatpush1.msra.mxu0 0.0
  %1068 = vmatprep.subr.mxu0 0.0
  %1069 = vmatpush1.msra.mxu0 0.0
  %1070 = vmatprep.subr.mxu0 0.0
  %1071 = vmatpush1.msra.mxu0 0.0
  %1072 = vmatprep.subr.mxu0 0.0
  %1073 = vmatpush1.msra.mxu0 0.0
  %1074 = vmatprep.subr.mxu0 0.0
  %1075 = vmatpush1.msra.mxu0 0.0
  %1076 = vmatprep.subr.mxu0 0.0
  %1077 = vmatpush1.msra.mxu0 0.0
  %1078 = vmatprep.subr.mxu0 0.0
  %1079 = vmatpush1.msra.mxu0 0.0
  %1080 = vmatprep.subr.mxu0 0.0
  %v1081 = vand.u32 %v190, 4294901760
  %1082 = vmatpush1.msra.mxu0 %v1081
  %1083 = vmatprep.subr.mxu0 0.0
  %v1084 = vand.u32 %v110, 4294901760
  %1085 = vmatpush1.msra.mxu0 %v1084
  %1086 = vmatprep.subr.mxu0 0.0
  %v1087 = vand.u32 %v109, 4294901760
  %1088 = vmatpush1.msra.mxu0 %v1087
  %1089 = vmatprep.subr.mxu0 0.0
  %v1090 = vand.u32 %v108, 4294901760
  %1091 = vmatpush1.msra.mxu0 %v1090
  %1092 = vmatprep.subr.mxu0 0.0
  %v1093 = vand.u32 %v107, 4294901760
  %1094 = vmatpush1.msra.mxu0 %v1093
  %1095 = vmatprep.subr.mxu0 0.0
  %1096 = vmatpush2.msra.mxu0 0.0
  %1097 = vmatprep.subr.mxu0 0.0
  %1098 = vmatpush2.msra.mxu0 0.0
  %1099 = vmatprep.subr.mxu0 0.0
  %1100 = vmatpush2.msra.mxu0 0.0
  %1101 = vmatprep.subr.mxu0 0.0
  %1102 = vmatpush2.msra.mxu0 0.0
  %1103 = vmatprep.subr.mxu0 0.0
  %1104 = vmatpush2.msra.mxu0 0.0
  %1105 = vmatprep.subr.mxu0 0.0
  %1106 = vmatpush2.msra.mxu0 0.0
  %1107 = vmatprep.subr.mxu0 0.0
  %1108 = vmatpush2.msra.mxu0 0.0
  %1109 = vmatprep.subr.mxu0 0.0
  %1110 = vmatpush2.msra.mxu0 0.0
  %1111 = vmatprep.subr.mxu0 0.0
  %1112 = vmatpush2.msra.mxu0 0.0
  %1113 = vmatprep.subr.mxu0 0.0
  %1114 = vmatpush2.msra.mxu0 0.0
  %1115 = vmatprep.subr.mxu0 0.0
  %1116 = vmatpush2.msra.mxu0 0.0
  %1117 = vmatprep.subr.mxu0 0.0
  %1118 = vmatpush2.msra.mxu0 0.0
  %1119 = vmatprep.subr.mxu0 0.0
  %1120 = vmatpush2.msra.mxu0 0.0
  %1121 = vmatprep.subr.mxu0 0.0
  %1122 = vmatpush2.msra.mxu0 0.0
  %1123 = vmatprep.subr.mxu0 0.0
  %1124 = vmatpush2.msra.mxu0 0.0
  %1125 = vmatprep.subr.mxu0 0.0
  %1126 = vmatpush2.msra.mxu0 0.0
  %1127 = vmatprep.mubr.f32.mxu0 0.0
  %v1128 = vand.u32 %v150, 4294901760
  %1129 = vmatmul.mubr.f32.gmra.mxu0 %v1128
  %v1130 = vpop.f32.mrf.mxu0
  %v1131 = vadd.f32 %v983, %v1130
  %v1132 = vpop.f32.mrf.mxu0
  %1133 = vmatprep.mubr.f32.mxu0 0.0
  %v1134 = vand.u32 %v153, 4294901760
  %1135 = vmatmul.mubr.f32.gmra.mxu0 %v1134
  %v1136 = vpop.f32.mrf.mxu0
  %v1137 = vadd.f32 %v989, %v1136
  %v1138 = vpop.f32.mrf.mxu0
  %1139 = vmatprep.mubr.f32.mxu0 0.0
  %v1140 = vand.u32 %v156, 4294901760
  %1141 = vmatmul.mubr.f32.gmra.mxu0 %v1140
  %v1142 = vpop.f32.mrf.mxu0
  %v1143 = vadd.f32 %v995, %v1142
  %v1144 = vpop.f32.mrf.mxu0
  %1145 = vmatprep.mubr.f32.mxu0 0.0
  %v1146 = vand.u32 %v159, 4294901760
  %1147 = vmatmul.mubr.f32.gmra.mxu0 %v1146
  %v1148 = vpop.f32.mrf.mxu0
  %v1149 = vadd.f32 %v1001, %v1148
  %v1150 = vpop.f32.mrf.mxu0
  %1151 = vmatprep.mubr.f32.mxu0 0.0
  %v1152 = vand.u32 %v162, 4294901760
  %1153 = vmatmul.mubr.f32.gmra.mxu0 %v1152
  %v1154 = vpop.f32.mrf.mxu0
  %v1155 = vadd.f32 %v1007, %v1154
  %v1156 = vpop.f32.mrf.mxu0
  %1157 = vmatprep.mubr.f32.mxu0 0.0
  %v1158 = vand.u32 %v165, 4294901760
  %1159 = vmatmul.mubr.f32.gmra.mxu0 %v1158
  %v1160 = vpop.f32.mrf.mxu0
  %v1161 = vadd.f32 %v1013, %v1160
  %v1162 = vpop.f32.mrf.mxu0
  %1163 = vmatprep.mubr.f32.mxu0 0.0
  %v1164 = vand.u32 %v168, 4294901760
  %1165 = vmatmul.mubr.f32.gmra.mxu0 %v1164
  %v1166 = vpop.f32.mrf.mxu0
  %v1167 = vadd.f32 %v1019, %v1166
  %v1168 = vpop.f32.mrf.mxu0
  %1169 = vmatprep.mubr.f32.mxu0 0.0
  %v1170 = vand.u32 %v171, 4294901760
  %1171 = vmatmul.mubr.f32.gmra.mxu0 %v1170
  %v1172 = vpop.f32.mrf.mxu0
  %v1173 = vadd.f32 %v1025, %v1172
  %v1174 = vpop.f32.mrf.mxu0
  %1175 = vmatprep.mubr.f32.mxu0 0.0
  %v1176 = vand.u32 %v174, 4294901760
  %1177 = vmatmul.mubr.f32.gmra.mxu0 %v1176
  %v1178 = vpop.f32.mrf.mxu0
  %v1179 = vadd.f32 %v1031, %v1178
  %v1180 = vpop.f32.mrf.mxu0
  %1181 = vmatprep.mubr.f32.mxu0 0.0
  %v1182 = vand.u32 %v177, 4294901760
  %1183 = vmatmul.mubr.f32.gmra.mxu0 %v1182
  %v1184 = vpop.f32.mrf.mxu0
  %v1185 = vadd.f32 %v1037, %v1184
  %v1186 = vpop.f32.mrf.mxu0
  %1187 = vmatprep.mubr.f32.mxu0 0.0
  %v1188 = vand.u32 %v180, 4294901760
  %1189 = vmatmul.mubr.f32.gmra.mxu0 %v1188
  %v1190 = vpop.f32.mrf.mxu0
  %v1191 = vadd.f32 %v1043, %v1190
  %v1192 = vpop.f32.mrf.mxu0
  %1193 = vmatprep.mubr.f32.mxu0 0.0
  %v1194 = vand.u32 %v183, 4294901760
  %1195 = vmatmul.mubr.f32.gmra.mxu0 %v1194
  %v1196 = vpop.f32.mrf.mxu0
  %v1197 = vadd.f32 %v1049, %v1196
  %v1198 = vpop.f32.mrf.mxu0
  %1199 = vmatprep.mubr.f32.mxu0 0.0
  %v1200 = vand.u32 %v186, 4294901760
  %1201 = vmatmul.mubr.f32.gmra.mxu0 %v1200
  %v1202 = vpop.f32.mrf.mxu0
  %v1203 = vadd.f32 %v1055, %v1202
  %v1204 = vpop.f32.mrf.mxu0
  %1205 = vdwg.mxu0
  %vm1206 = vcmask 261120
  %1207 = vst.msk [vmem:[%s3] sm:$0xff] %vm1206, %v1131
  %1208 = vst.msk [vmem:[%s3 + $0x8] sm:$0xff] %vm1206, %v1137
  %1209 = vst.msk [vmem:[%s3 + $0x10] sm:$0xff] %vm1206, %v1143
  %1210 = vst.msk [vmem:[%s3 + $0x18] sm:$0xff] %vm1206, %v1149
  %1211 = vst.msk [vmem:[%s3 + $0x20] sm:$0xff] %vm1206, %v1155
  %1212 = vst.msk [vmem:[%s3 + $0x28] sm:$0xff] %vm1206, %v1161
  %1213 = vst.msk [vmem:[%s3 + $0x30] sm:$0xff] %vm1206, %v1167
  %1214 = vst.msk [vmem:[%s3 + $0x38] sm:$0xff] %vm1206, %v1173
  %1215 = vst.msk [vmem:[%s3 + $0x40] sm:$0xff] %vm1206, %v1179
  %1216 = vst.msk [vmem:[%s3 + $0x48] sm:$0xff] %vm1206, %v1185
  %1217 = vst.msk [vmem:[%s3 + $0x50] sm:$0xff] %vm1206, %v1191
  %1218 = vst.msk [vmem:[%s3 + $0x58] sm:$0xff] %vm1206, %v1197
  %vm1219 = vcmask 257024
  %1220 = vst.msk [vmem:[%s3 + $0x60] sm:$0xf] %vm1219, %v1203
  // Predicated region
  $region14: #{tpu_custom_call.1} parent=0 // pred_check
    _
  $region15: #{tpu_custom_call.1} parent=0 // pred_check_branch
    %1222 = sbr.rel (0) target = $region17
  $region16: #{tpu_custom_call.1} parent=0 // pred_region
    _
  $region17: #{tpu_custom_call.1} parent=0 // pred_fallthru
    _
  // Predicated region
  $region18: #{tpu_custom_call.1} parent=0 // pred_check
    _
  $region19: #{tpu_custom_call.1} parent=0 // pred_check_branch
    %1224 = sbr.rel (0) target = $region21
  $region20: #{tpu_custom_call.1} parent=0 // pred_region
    _
  $region21: #{tpu_custom_call.1} parent=0 // pred_fallthru
    _

</llo_original>
